<compile_context>
chip_gen: v7x
topology: tpu7x:2x2x1
jax: 0.10.0
libtpu: 0.0.40
codegen_flags: <defaults>
</compile_context>

<pallas_src>
import math
import functools

import jax
import jax.numpy as jnp
from jax import lax
from jax.experimental import pallas as pl
from jax.experimental.pallas import tpu as pltpu


def _vit_attn_kernel(x_ref, wqkv_ref, bqkv_ref, wo_ref, bo_ref, o_ref, ctx_ref,
                     *, num_heads: int, head_dim: int):
    H = num_heads * head_dim
    x = x_ref[0]                                                   # (S, H) bf16

    # Fused QKV projection: one wide MXU matmul, f32 accumulation.
    # Columns are [all-Q | all-K | all-V]; the Q third is pre-scaled by
    # 1/sqrt(head_dim) (folded into the weight in the wrapper).
    qkv = jnp.dot(x, wqkv_ref[...], preferred_element_type=jnp.float32)
    qkv = qkv + bqkv_ref[0]                                        # (S, 3H) f32

    q_all = qkv[:, :H]          # lane-aligned, H-wide thirds (free views)
    k_all = qkv[:, H:2 * H]
    v_all = qkv[:, 2 * H:]

    for h in range(num_heads):
        sl = slice(h * head_dim, (h + 1) * head_dim)
        q = q_all[:, sl].astype(jnp.bfloat16)                      # (S, dh)
        k = k_all[:, sl].astype(jnp.bfloat16)
        v = v_all[:, sl].astype(jnp.bfloat16)

        # q @ k^T without an explicit transpose (contract last dim of both).
        s = lax.dot_general(q, k, (((1,), (1,)), ((), ())),
                            preferred_element_type=jnp.float32)    # (S, S) f32

        # Softmax in f32; normalization deferred to the (S, dh) context.
        m = jnp.max(s, axis=-1, keepdims=True)
        p = jnp.exp(s - m)
        l = jnp.sum(p, axis=-1, keepdims=True)
        # attention_dropout(p=0) == identity

        ctx = jnp.dot(p.astype(jnp.bfloat16), v,
                      preferred_element_type=jnp.float32)          # (S, dh)
        ctx = ctx * pl.reciprocal(l, approx=True)

        # Write this head's context into its column slab of the VMEM scratch:
        # bounds the head's live range and replaces the old jnp.concatenate.
        ctx_ref[:, sl] = ctx

    # Output dense projection: one wide matmul over all heads.
    out = jnp.dot(ctx_ref[...].astype(jnp.bfloat16), wo_ref[...],
                  preferred_element_type=jnp.float32)
    out = out + bo_ref[0]
    # dropout(p=0) == identity
    o_ref[0] = out.astype(o_ref.dtype)


def vit_self_attention(x, w_qkv, b_qkv, w_o, b_o, *, num_heads: int):
    """x: (B, S, H); w_qkv: (H, 3H); b_qkv: (1, 3H); w_o: (H, H); b_o: (1, H).

    Weights are stored transposed relative to nn.Linear ((in, out)); w_qkv uses
    the module's interleaved per-head [q|k|v] column packing.
    """
    B, S, H = x.shape
    head_dim = H // num_heads
    scale = 1.0 / math.sqrt(head_dim)

    # ---- trace-time weight preprocessing (runs in XLA once, not in-kernel) ----
    # 1) Permute interleaved per-head [q|k|v] slabs -> contiguous [Q|K|V] thirds.
    w_p = w_qkv.reshape(H, num_heads, 3, head_dim).transpose(0, 2, 1, 3)
    w_p = w_p.reshape(H, 3 * H)
    b_p = b_qkv.reshape(1, num_heads, 3, head_dim).transpose(0, 2, 1, 3)
    b_p = b_p.reshape(1, 3 * H)
    # 2) Fold the 1/sqrt(head_dim) score scale into the Q columns (free).
    col_scale = jnp.concatenate(
        [jnp.full((H,), scale, dtype=w_p.dtype),
         jnp.ones((2 * H,), dtype=w_p.dtype)])
    w_p = w_p * col_scale
    b_p = (b_p * col_scale).astype(jnp.float32)
    # 3) bf16 matmul operands; biases stay f32.
    x_bf = x.astype(jnp.bfloat16)
    w_p = w_p.astype(jnp.bfloat16)
    w_o_bf = w_o.astype(jnp.bfloat16)
    b_o_f = b_o.astype(jnp.float32)

    kernel = functools.partial(_vit_attn_kernel,
                               num_heads=num_heads, head_dim=head_dim)

    # TODO(synk): for S >~ 1K, add a KV-tile grid axis with online softmax
    # (flash-style) instead of materializing per-head (S, S) scores, and add a
    # query-tile parallel axis so v7x's two TensorCores are both used at B=1.
    return pl.pallas_call(
        kernel,
        out_shape=jax.ShapeDtypeStruct((B, S, H), x.dtype),
        grid_spec=pltpu.PrefetchScalarGridSpec(
            num_scalar_prefetch=0,
            grid=(B,),
            in_specs=[
                pl.BlockSpec((1, S, H), lambda b: (b, 0, 0)),
                pl.BlockSpec((H, 3 * H), lambda b: (0, 0)),   # constant index ->
                pl.BlockSpec((1, 3 * H), lambda b: (0, 0)),   # fetched once
                pl.BlockSpec((H, H), lambda b: (0, 0)),
                pl.BlockSpec((1, H), lambda b: (0, 0)),
            ],
            out_specs=pl.BlockSpec((1, S, H), lambda b: (b, 0, 0)),
            scratch_shapes=[pltpu.VMEM((S, H), jnp.float32)],
        ),
        compiler_params=pltpu.CompilerParams(
            dimension_semantics=("parallel",),
            vmem_limit_bytes=64 * 1024 * 1024),
    )(x_bf, w_p, b_p, w_o_bf, b_o_f)


def _reference(x, w_qkv, b_qkv, w_o, b_o, num_heads):
    B, S, H = x.shape
    dh = H // num_heads
    qkv = x @ w_qkv + b_qkv[0]                                  # (B, S, 3H)
    qkv = qkv.reshape(B, S, num_heads, 3 * dh).transpose(0, 2, 1, 3)
    q, k, v = jnp.split(qkv, 3, axis=-1)                        # (B, nH, S, dh)
    s = jnp.einsum("bhqd,bhkd->bhqk", q, k) / math.sqrt(dh)
    p = jax.nn.softmax(s, axis=-1)
    ctx = jnp.einsum("bhqk,bhkd->bhqd", p, v)                   # (B, nH, S, dh)
    ctx = ctx.transpose(0, 2, 1, 3).reshape(B, S, H)
    return ctx @ w_o + b_o[0]


if __name__ == "__main__":
    B, S, H = 2, 8, 32
    num_heads = 4

    key = jax.random.PRNGKey(0)
    kx, k1, k2, k3, k4 = jax.random.split(key, 5)
    x = jax.random.normal(kx, (B, S, H), dtype=jnp.float32)
    # Deterministic synthetic parameters (nn.Linear shapes, stored transposed).
    w_qkv = jax.random.normal(k1, (H, 3 * H), dtype=jnp.float32) * 0.02
    b_qkv = jax.random.normal(k2, (1, 3 * H), dtype=jnp.float32) * 0.02
    w_o = jax.random.normal(k3, (H, H), dtype=jnp.float32) * 0.02
    b_o = jax.random.normal(k4, (1, H), dtype=jnp.float32) * 0.02

    out = vit_self_attention(x, w_qkv, b_qkv, w_o, b_o, num_heads=num_heads)
    out = jax.block_until_ready(out)

    ref = _reference(x, w_qkv, b_qkv, w_o, b_o, num_heads)
    assert out.shape == (B, S, H)
    # bf16 matmul operands + approx reciprocal -> loosened tolerance vs f32 ref.
    assert jnp.allclose(out, ref, atol=2e-2, rtol=2e-2), "mismatch vs reference"

    print("KERNEL_OK")
</pallas_src>

<mosaic_0001>
module attributes {stable_mosaic.version = 11 : i64} {
  func.func @_vit_attn_kernel(%arg0: i32, %arg1: memref<1x8x32xbf16, #tpu.memory_space<vmem>>, %arg2: memref<32x96xbf16, #tpu.memory_space<vmem>>, %arg3: memref<1x96xf32, #tpu.memory_space<vmem>>, %arg4: memref<32x32xbf16, #tpu.memory_space<vmem>>, %arg5: memref<1x32xf32, #tpu.memory_space<vmem>>, %arg6: memref<1x8x32xf32, #tpu.memory_space<vmem>>, %arg7: memref<8x32xf32, #tpu.memory_space<vmem>>) attributes {dimension_semantics = [#tpu.dimension_semantics<parallel>], iteration_bounds = array<i64: 2>, scalar_prefetch = 0 : i64, scratch_operands = 1 : i64, tpu.core_type = #tpu.core_type<tc>, window_params = [{transform_indices = @transform_0, window_bounds = array<i64: 1, 8, 32>}, {pipeline_mode = #tpu.pipeline_mode<synchronous>, transform_indices = @transform_1, window_bounds = array<i64: 32, 96>}, {pipeline_mode = #tpu.pipeline_mode<synchronous>, transform_indices = @transform_2, window_bounds = array<i64: 1, 96>}, {pipeline_mode = #tpu.pipeline_mode<synchronous>, transform_indices = @transform_3, window_bounds = array<i64: 32, 32>}, {pipeline_mode = #tpu.pipeline_mode<synchronous>, transform_indices = @transform_4, window_bounds = array<i64: 1, 32>}, {transform_indices = @transform_5, window_bounds = array<i64: 1, 8, 32>}]} {
    %c0 = arith.constant 0 : index
    %c0_0 = arith.constant 0 : index
    %c0_1 = arith.constant 0 : index
    %0 = vector.load %arg1[%c0, %c0_0, %c0_1] : memref<1x8x32xbf16, #tpu.memory_space<vmem>>, vector<1x8x32xbf16>
    %1 = vector.shape_cast %0 : vector<1x8x32xbf16> to vector<8x32xbf16>
    %c0_2 = arith.constant 0 : index
    %c0_3 = arith.constant 0 : index
    %2 = vector.load %arg2[%c0_2, %c0_3] : memref<32x96xbf16, #tpu.memory_space<vmem>>, vector<32x96xbf16>
    %cst = arith.constant dense<0.000000e+00> : vector<8x96xf32>
    %3 = tpu.matmul %1, %2, %cst {dimension_numbers = #tpu.dot_dimension_numbers<[1], [0], [0], [1], [0, 0, 1, 1], [], []>} : vector<8x32xbf16>, vector<32x96xbf16>, vector<8x96xf32> -> vector<8x96xf32>
    %c0_4 = arith.constant 0 : index
    %c0_5 = arith.constant 0 : index
    %4 = vector.load %arg3[%c0_4, %c0_5] : memref<1x96xf32, #tpu.memory_space<vmem>>, vector<1x96xf32>
    %5 = vector.shape_cast %4 : vector<1x96xf32> to vector<96xf32>
    %6 = vector.shape_cast %5 : vector<96xf32> to vector<1x96xf32>
    %7 = vector.broadcast %6 : vector<1x96xf32> to vector<8x96xf32>
    %8 = arith.addf %3, %7 : vector<8x96xf32>
    %9 = vector.extract_strided_slice %8 {offsets = [0, 0], sizes = [8, 32], strides = [1, 1]} : vector<8x96xf32> to vector<8x32xf32>
    %10 = vector.extract_strided_slice %8 {offsets = [0, 32], sizes = [8, 32], strides = [1, 1]} : vector<8x96xf32> to vector<8x32xf32>
    %11 = vector.extract_strided_slice %8 {offsets = [0, 64], sizes = [8, 32], strides = [1, 1]} : vector<8x96xf32> to vector<8x32xf32>
    %12 = vector.extract_strided_slice %9 {offsets = [0, 0], sizes = [8, 8], strides = [1, 1]} : vector<8x32xf32> to vector<8x8xf32>
    %13 = arith.truncf %12 : vector<8x8xf32> to vector<8x8xbf16>
    %14 = vector.extract_strided_slice %10 {offsets = [0, 0], sizes = [8, 8], strides = [1, 1]} : vector<8x32xf32> to vector<8x8xf32>
    %15 = arith.truncf %14 : vector<8x8xf32> to vector<8x8xbf16>
    %16 = vector.extract_strided_slice %11 {offsets = [0, 0], sizes = [8, 8], strides = [1, 1]} : vector<8x32xf32> to vector<8x8xf32>
    %17 = arith.truncf %16 : vector<8x8xf32> to vector<8x8xbf16>
    %cst_6 = arith.constant dense<0.000000e+00> : vector<8x8xf32>
    %18 = tpu.matmul %13, %15, %cst_6 {dimension_numbers = #tpu.dot_dimension_numbers<[1], [1], [0], [0], [0, 0, 1, 0], [], []>} : vector<8x8xbf16>, vector<8x8xbf16>, vector<8x8xf32> -> vector<8x8xf32>
    %cst_7 = arith.constant dense<0xFF800000> : vector<8xf32>
    %19 = vector.multi_reduction <maximumf>, %18, %cst_7 [1] : vector<8x8xf32> to vector<8xf32>
    %20 = vector.shape_cast %19 : vector<8xf32> to vector<8x1xf32>
    %21 = vector.broadcast %20 : vector<8x1xf32> to vector<8x8xf32>
    %22 = arith.subf %18, %21 : vector<8x8xf32>
    %23 = math.exp %22 : vector<8x8xf32>
    %cst_8 = arith.constant dense<0.000000e+00> : vector<8xf32>
    %24 = vector.multi_reduction <add>, %23, %cst_8 [1] : vector<8x8xf32> to vector<8xf32>
    %25 = vector.shape_cast %24 : vector<8xf32> to vector<8x1xf32>
    %26 = arith.truncf %23 : vector<8x8xf32> to vector<8x8xbf16>
    %cst_9 = arith.constant dense<0.000000e+00> : vector<8x8xf32>
    %27 = tpu.matmul %26, %17, %cst_9 {dimension_numbers = #tpu.dot_dimension_numbers<[1], [0], [0], [1], [0, 0, 1, 1], [], []>} : vector<8x8xbf16>, vector<8x8xbf16>, vector<8x8xf32> -> vector<8x8xf32>
    %28 = tpu.reciprocal %25 {approx = true} : vector<8x1xf32> -> vector<8x1xf32>
    %29 = vector.broadcast %28 : vector<8x1xf32> to vector<8x8xf32>
    %30 = arith.mulf %27, %29 : vector<8x8xf32>
    %c0_10 = arith.constant 0 : index
    %c0_11 = arith.constant 0 : index
    %31 = vector.load %arg7[%c0_10, %c0_11] : memref<8x32xf32, #tpu.memory_space<vmem>>, vector<8x8xf32>
    tpu.vector_store %arg7[%c0_10, %c0_11], %30 {strides = array<i32>} : memref<8x32xf32, #tpu.memory_space<vmem>>, vector<8x8xf32>,
    %32 = vector.extract_strided_slice %9 {offsets = [0, 8], sizes = [8, 8], strides = [1, 1]} : vector<8x32xf32> to vector<8x8xf32>
    %33 = arith.truncf %32 : vector<8x8xf32> to vector<8x8xbf16>
    %34 = vector.extract_strided_slice %10 {offsets = [0, 8], sizes = [8, 8], strides = [1, 1]} : vector<8x32xf32> to vector<8x8xf32>
    %35 = arith.truncf %34 : vector<8x8xf32> to vector<8x8xbf16>
    %36 = vector.extract_strided_slice %11 {offsets = [0, 8], sizes = [8, 8], strides = [1, 1]} : vector<8x32xf32> to vector<8x8xf32>
    %37 = arith.truncf %36 : vector<8x8xf32> to vector<8x8xbf16>
    %cst_12 = arith.constant dense<0.000000e+00> : vector<8x8xf32>
    %38 = tpu.matmul %33, %35, %cst_12 {dimension_numbers = #tpu.dot_dimension_numbers<[1], [1], [0], [0], [0, 0, 1, 0], [], []>} : vector<8x8xbf16>, vector<8x8xbf16>, vector<8x8xf32> -> vector<8x8xf32>
    %cst_13 = arith.constant dense<0xFF800000> : vector<8xf32>
    %39 = vector.multi_reduction <maximumf>, %38, %cst_13 [1] : vector<8x8xf32> to vector<8xf32>
    %40 = vector.shape_cast %39 : vector<8xf32> to vector<8x1xf32>
    %41 = vector.broadcast %40 : vector<8x1xf32> to vector<8x8xf32>
    %42 = arith.subf %38, %41 : vector<8x8xf32>
    %43 = math.exp %42 : vector<8x8xf32>
    %cst_14 = arith.constant dense<0.000000e+00> : vector<8xf32>
    %44 = vector.multi_reduction <add>, %43, %cst_14 [1] : vector<8x8xf32> to vector<8xf32>
    %45 = vector.shape_cast %44 : vector<8xf32> to vector<8x1xf32>
    %46 = arith.truncf %43 : vector<8x8xf32> to vector<8x8xbf16>
    %cst_15 = arith.constant dense<0.000000e+00> : vector<8x8xf32>
    %47 = tpu.matmul %46, %37, %cst_15 {dimension_numbers = #tpu.dot_dimension_numbers<[1], [0], [0], [1], [0, 0, 1, 1], [], []>} : vector<8x8xbf16>, vector<8x8xbf16>, vector<8x8xf32> -> vector<8x8xf32>
    %48 = tpu.reciprocal %45 {approx = true} : vector<8x1xf32> -> vector<8x1xf32>
    %49 = vector.broadcast %48 : vector<8x1xf32> to vector<8x8xf32>
    %50 = arith.mulf %47, %49 : vector<8x8xf32>
    %c0_16 = arith.constant 0 : index
    %c8 = arith.constant 8 : index
    %51 = vector.load %arg7[%c0_16, %c8] : memref<8x32xf32, #tpu.memory_space<vmem>>, vector<8x8xf32>
    tpu.vector_store %arg7[%c0_16, %c8], %50 {strides = array<i32>} : memref<8x32xf32, #tpu.memory_space<vmem>>, vector<8x8xf32>,
    %52 = vector.extract_strided_slice %9 {offsets = [0, 16], sizes = [8, 8], strides = [1, 1]} : vector<8x32xf32> to vector<8x8xf32>
    %53 = arith.truncf %52 : vector<8x8xf32> to vector<8x8xbf16>
    %54 = vector.extract_strided_slice %10 {offsets = [0, 16], sizes = [8, 8], strides = [1, 1]} : vector<8x32xf32> to vector<8x8xf32>
    %55 = arith.truncf %54 : vector<8x8xf32> to vector<8x8xbf16>
    %56 = vector.extract_strided_slice %11 {offsets = [0, 16], sizes = [8, 8], strides = [1, 1]} : vector<8x32xf32> to vector<8x8xf32>
    %57 = arith.truncf %56 : vector<8x8xf32> to vector<8x8xbf16>
    %cst_17 = arith.constant dense<0.000000e+00> : vector<8x8xf32>
    %58 = tpu.matmul %53, %55, %cst_17 {dimension_numbers = #tpu.dot_dimension_numbers<[1], [1], [0], [0], [0, 0, 1, 0], [], []>} : vector<8x8xbf16>, vector<8x8xbf16>, vector<8x8xf32> -> vector<8x8xf32>
    %cst_18 = arith.constant dense<0xFF800000> : vector<8xf32>
    %59 = vector.multi_reduction <maximumf>, %58, %cst_18 [1] : vector<8x8xf32> to vector<8xf32>
    %60 = vector.shape_cast %59 : vector<8xf32> to vector<8x1xf32>
    %61 = vector.broadcast %60 : vector<8x1xf32> to vector<8x8xf32>
    %62 = arith.subf %58, %61 : vector<8x8xf32>
    %63 = math.exp %62 : vector<8x8xf32>
    %cst_19 = arith.constant dense<0.000000e+00> : vector<8xf32>
    %64 = vector.multi_reduction <add>, %63, %cst_19 [1] : vector<8x8xf32> to vector<8xf32>
    %65 = vector.shape_cast %64 : vector<8xf32> to vector<8x1xf32>
    %66 = arith.truncf %63 : vector<8x8xf32> to vector<8x8xbf16>
    %cst_20 = arith.constant dense<0.000000e+00> : vector<8x8xf32>
    %67 = tpu.matmul %66, %57, %cst_20 {dimension_numbers = #tpu.dot_dimension_numbers<[1], [0], [0], [1], [0, 0, 1, 1], [], []>} : vector<8x8xbf16>, vector<8x8xbf16>, vector<8x8xf32> -> vector<8x8xf32>
    %68 = tpu.reciprocal %65 {approx = true} : vector<8x1xf32> -> vector<8x1xf32>
    %69 = vector.broadcast %68 : vector<8x1xf32> to vector<8x8xf32>
    %70 = arith.mulf %67, %69 : vector<8x8xf32>
    %c0_21 = arith.constant 0 : index
    %c16 = arith.constant 16 : index
    %71 = vector.load %arg7[%c0_21, %c16] : memref<8x32xf32, #tpu.memory_space<vmem>>, vector<8x8xf32>
    tpu.vector_store %arg7[%c0_21, %c16], %70 {strides = array<i32>} : memref<8x32xf32, #tpu.memory_space<vmem>>, vector<8x8xf32>,
    %72 = vector.extract_strided_slice %9 {offsets = [0, 24], sizes = [8, 8], strides = [1, 1]} : vector<8x32xf32> to vector<8x8xf32>
    %73 = arith.truncf %72 : vector<8x8xf32> to vector<8x8xbf16>
    %74 = vector.extract_strided_slice %10 {offsets = [0, 24], sizes = [8, 8], strides = [1, 1]} : vector<8x32xf32> to vector<8x8xf32>
    %75 = arith.truncf %74 : vector<8x8xf32> to vector<8x8xbf16>
    %76 = vector.extract_strided_slice %11 {offsets = [0, 24], sizes = [8, 8], strides = [1, 1]} : vector<8x32xf32> to vector<8x8xf32>
    %77 = arith.truncf %76 : vector<8x8xf32> to vector<8x8xbf16>
    %cst_22 = arith.constant dense<0.000000e+00> : vector<8x8xf32>
    %78 = tpu.matmul %73, %75, %cst_22 {dimension_numbers = #tpu.dot_dimension_numbers<[1], [1], [0], [0], [0, 0, 1, 0], [], []>} : vector<8x8xbf16>, vector<8x8xbf16>, vector<8x8xf32> -> vector<8x8xf32>
    %cst_23 = arith.constant dense<0xFF800000> : vector<8xf32>
    %79 = vector.multi_reduction <maximumf>, %78, %cst_23 [1] : vector<8x8xf32> to vector<8xf32>
    %80 = vector.shape_cast %79 : vector<8xf32> to vector<8x1xf32>
    %81 = vector.broadcast %80 : vector<8x1xf32> to vector<8x8xf32>
    %82 = arith.subf %78, %81 : vector<8x8xf32>
    %83 = math.exp %82 : vector<8x8xf32>
    %cst_24 = arith.constant dense<0.000000e+00> : vector<8xf32>
    %84 = vector.multi_reduction <add>, %83, %cst_24 [1] : vector<8x8xf32> to vector<8xf32>
    %85 = vector.shape_cast %84 : vector<8xf32> to vector<8x1xf32>
    %86 = arith.truncf %83 : vector<8x8xf32> to vector<8x8xbf16>
    %cst_25 = arith.constant dense<0.000000e+00> : vector<8x8xf32>
    %87 = tpu.matmul %86, %77, %cst_25 {dimension_numbers = #tpu.dot_dimension_numbers<[1], [0], [0], [1], [0, 0, 1, 1], [], []>} : vector<8x8xbf16>, vector<8x8xbf16>, vector<8x8xf32> -> vector<8x8xf32>
    %88 = tpu.reciprocal %85 {approx = true} : vector<8x1xf32> -> vector<8x1xf32>
    %89 = vector.broadcast %88 : vector<8x1xf32> to vector<8x8xf32>
    %90 = arith.mulf %87, %89 : vector<8x8xf32>
    %c0_26 = arith.constant 0 : index
    %c24 = arith.constant 24 : index
    %91 = vector.load %arg7[%c0_26, %c24] : memref<8x32xf32, #tpu.memory_space<vmem>>, vector<8x8xf32>
    tpu.vector_store %arg7[%c0_26, %c24], %90 {strides = array<i32>} : memref<8x32xf32, #tpu.memory_space<vmem>>, vector<8x8xf32>,
    %c0_27 = arith.constant 0 : index
    %c0_28 = arith.constant 0 : index
    %92 = vector.load %arg7[%c0_27, %c0_28] : memref<8x32xf32, #tpu.memory_space<vmem>>, vector<8x32xf32>
    %93 = arith.truncf %92 : vector<8x32xf32> to vector<8x32xbf16>
    %c0_29 = arith.constant 0 : index
    %c0_30 = arith.constant 0 : index
    %94 = vector.load %arg4[%c0_29, %c0_30] : memref<32x32xbf16, #tpu.memory_space<vmem>>, vector<32x32xbf16>
    %cst_31 = arith.constant dense<0.000000e+00> : vector<8x32xf32>
    %95 = tpu.matmul %93, %94, %cst_31 {dimension_numbers = #tpu.dot_dimension_numbers<[1], [0], [0], [1], [0, 0, 1, 1], [], []>} : vector<8x32xbf16>, vector<32x32xbf16>, vector<8x32xf32> -> vector<8x32xf32>
    %c0_32 = arith.constant 0 : index
    %c0_33 = arith.constant 0 : index
    %96 = vector.load %arg5[%c0_32, %c0_33] : memref<1x32xf32, #tpu.memory_space<vmem>>, vector<1x32xf32>
    %97 = vector.shape_cast %96 : vector<1x32xf32> to vector<32xf32>
    %98 = vector.shape_cast %97 : vector<32xf32> to vector<1x32xf32>
    %99 = vector.broadcast %98 : vector<1x32xf32> to vector<8x32xf32>
    %100 = arith.addf %95, %99 : vector<8x32xf32>
    %c0_34 = arith.constant 0 : index
    %c0_35 = arith.constant 0 : index
    %c0_36 = arith.constant 0 : index
    %101 = vector.load %arg6[%c0_34, %c0_35, %c0_36] : memref<1x8x32xf32, #tpu.memory_space<vmem>>, vector<1x8x32xf32>
    %102 = vector.shape_cast %101 : vector<1x8x32xf32> to vector<8x32xf32>
    %103 = vector.shape_cast %100 : vector<8x32xf32> to vector<1x8x32xf32>
    tpu.vector_store %arg6[%c0_34, %c0_35, %c0_36], %103 {strides = array<i32>} : memref<1x8x32xf32, #tpu.memory_space<vmem>>, vector<1x8x32xf32>,
    return
  }
  func.func @transform_0(%arg0: i32) -> (i32, i32, i32) {
    %c0_i32 = arith.constant 0 : i32
    %c0_i32_0 = arith.constant 0 : i32
    %c0_i32_1 = arith.constant 0 : i32
    return %arg0, %c0_i32, %c0_i32_0 : i32, i32, i32
  }
  func.func @transform_1(%arg0: i32) -> (i32, i32) {
    %c0_i32 = arith.constant 0 : i32
    %c0_i32_0 = arith.constant 0 : i32
    %c0_i32_1 = arith.constant 0 : i32
    return %c0_i32, %c0_i32_0 : i32, i32
  }
  func.func @transform_2(%arg0: i32) -> (i32, i32) {
    %c0_i32 = arith.constant 0 : i32
    %c0_i32_0 = arith.constant 0 : i32
    %c0_i32_1 = arith.constant 0 : i32
    return %c0_i32, %c0_i32_0 : i32, i32
  }
  func.func @transform_3(%arg0: i32) -> (i32, i32) {
    %c0_i32 = arith.constant 0 : i32
    %c0_i32_0 = arith.constant 0 : i32
    %c0_i32_1 = arith.constant 0 : i32
    return %c0_i32, %c0_i32_0 : i32, i32
  }
  func.func @transform_4(%arg0: i32) -> (i32, i32) {
    %c0_i32 = arith.constant 0 : i32
    %c0_i32_0 = arith.constant 0 : i32
    %c0_i32_1 = arith.constant 0 : i32
    return %c0_i32, %c0_i32_0 : i32, i32
  }
  func.func @transform_5(%arg0: i32) -> (i32, i32, i32) {
    %c0_i32 = arith.constant 0 : i32
    %c0_i32_0 = arith.constant 0 : i32
    %c0_i32_1 = arith.constant 0 : i32
    return %arg0, %c0_i32, %c0_i32_0 : i32, i32, i32
  }
}

</mosaic_0001>

<llo_original>
// kernel: tpu_custom_call.1
$region0: #{tpu_custom_call.1}
  #allocation0 [shape = 'u32[]', space=smem, size = 0x4, offset = 0x4, fixed_abs, tag = 'smem constant byte address 0x4 - core index']
  #allocation1 [shape = 'u32[144,128]{1,0:T(1,128)}', space=vmem, size = 0x12000, scoped, tag = 'internal scratch']
  #allocation2 [shape = 'f32[8,32]{1,0:T(8,128)}', space=vmem, size = 0x1000, scoped, tag = 'scratch operand']
  %s0 = inlined_call_operand.hbm [shape: bf16[2,8,32], index: 0, kind: input, shape index: {}]
  %s1 = inlined_call_operand.hbm [shape: bf16[32,96], index: 1, kind: input, shape index: {}]
  %s2 = inlined_call_operand.hbm [shape: f32[1,96], index: 2, kind: input, shape index: {}]
  %s3 = inlined_call_operand.hbm [shape: bf16[32,32], index: 3, kind: input, shape index: {}]
  %s4 = inlined_call_operand.hbm [shape: f32[1,32], index: 4, kind: input, shape index: {}]
  %s5 = inlined_call_operand.hbm [shape: f32[2,8,32], index: 5, kind: output, shape index: {}]
  %s6 = sld [smem:[#allocation0]]
  $region73: #{tpu_custom_call.1} parent=0
    _
  %s8 = ssub.s32 1, %s6
  %s9 = scalar_select 0, %s8, %s6
  $region1: #{tpu_custom_call.1} parent=0
    #allocation3 [shape = 'u8[4096]{0}', space=vmem, size = 0x1000, scoped, tag = 'input window, operand 0']
    #allocation4 [shape = 's32[2]{0}', space=sflag, size = 0x8, scoped, tag = 'scoped memory for tpu_custom_call.1']
    #allocation5 [shape = 's32[2]{0}', space=sflag, size = 0x8, scoped, tag = 'scoped memory for tpu_custom_call.1']
    #allocation6 [shape = 'u8[8192]{0}', space=vmem, size = 0x2000, scoped, tag = 'input window, operand 1, single buffered']
    #allocation7 [shape = 's32[1]{0}', space=sflag, size = 0x4, scoped, tag = 'scoped memory for tpu_custom_call.1']
    #allocation8 [shape = 'u8[512]{0}', space=vmem, size = 0x400, scoped, tag = 'input window, operand 2, single buffered']
    #allocation9 [shape = 'u8[8192]{0}', space=vmem, size = 0x2000, scoped, tag = 'input window, operand 3, single buffered']
    #allocation10 [shape = 's32[1]{0}', space=sflag, size = 0x4, scoped, tag = 'scoped memory for tpu_custom_call.1']
    #allocation11 [shape = 'u8[512]{0}', space=vmem, size = 0x400, scoped, tag = 'input window, operand 4, single buffered']
    #allocation12 [shape = 'u8[8192]{0}', space=vmem, size = 0x2000, scoped, tag = 'output window, operand 0']
    %10 = vsyncpa [#allocation4], 0
    %s11 = scalar_lea.sflag [#allocation4], 1
    %12 = vsyncpa %s11, 0
    %13 = vsyncpa [#allocation7], 0
    %14 = vsyncpa [#allocation10], 0
    %15 = vsyncpa [#allocation5], 0
    %s16 = scalar_lea.sflag [#allocation5], 1
    %17 = vsyncpa %s16, 0
    loop: start=0, step=1, limit=4
    $region2: #{tpu_custom_call.1} parent=1 // loop_pre_header
      _
    $region3: #{tpu_custom_call.1} parent=1 // loop_header
      %s19 = sphi 0, %s23
      %p20 = scmp.ge.s32.totalorder %s19, 4
      %s29 = sphi 0, %s31
      %s32 = sphi 0, %s29
      %s33 = sphi 0, %s32
      %s49 = sphi 0, %s33
      %s53 = sphi 0, %s53
      %s55 = sphi 0, %s53
      %s56 = sphi 0, %s55
      %s70 = sphi 0, %s56
      %s74 = sphi 0, %s74
      %s76 = sphi 0, %s74
      %s77 = sphi 0, %s76
      %s91 = sphi 0, %s77
      %s95 = sphi 0, %s95
      %s97 = sphi 0, %s95
      %s98 = sphi 0, %s97
      %s112 = sphi 0, %s98
      %s116 = sphi 0, %s116
      %s118 = sphi 0, %s116
      %s119 = sphi 0, %s118
      %s133 = sphi 0, %s119
      %s139 = sphi 0, %s141
      %s142 = sphi 0, %s139
      %s143 = sphi 0, %s142
      %s159 = sphi 0, %s143
    $region4: #{tpu_custom_call.1} parent=1 // loop_header_branch
      %22 = sbr.rel (%p20) target = $region8
    $region5: #{tpu_custom_call.1} parent=1 // loop_body
      %s24 = ssub.s32 %s19, 1
      %s25 = ssub.s32 %s19, 2
      %s26 = sadd.s32 %s19, 1
      %s27 = ssub.s32 %s19, %s26
      %p28 = scmp.eq.s32.totalorder %s27, 0
      %s30 = sadd.s32 %s29, 1
      %s31 = scalar_select %p28, %s29, %s30
      %p34 = pneg %p28
      %p35 = scmp.eq.s32.totalorder %s19, 1
      %p36 = por %p34, %p35
      %p37 = scmp.ne.s32.totalorder %s29, %s32
      %p38 = scmp.eq.s32.totalorder %s19, 0
      %p39 = por %p37, %p38
      %p40 = scmp.ne.s32.totalorder %s29, %s32
      %p41 = scmp.eq.s32.totalorder %s24, 1
      %p42 = por %p40, %p41
      %p43 = scmp.ne.s32.totalorder %s32, %s33
      %p44 = scmp.eq.s32.totalorder %s24, 0
      %p45 = por %p43, %p44
      %p46 = scmp.ne.s32.totalorder %s32, %s33
      %p47 = scmp.eq.s32.totalorder %s25, 1
      %p48 = por %p46, %p47
      %p50 = scmp.ne.s32.totalorder %s33, %s49
      %p51 = scmp.eq.s32.totalorder %s25, 0
      %p52 = por %p50, %p51
      %s54 = sadd.s32 %s53, 1
      %p57 = scmp.eq.s32.totalorder %s19, 1
      %p58 = scmp.ne.s32.totalorder %s53, %s55
      %p59 = scmp.eq.s32.totalorder %s19, 0
      %p60 = por %p58, %p59
      %p61 = scmp.ne.s32.totalorder %s53, %s55
      %p62 = scmp.eq.s32.totalorder %s24, 1
      %p63 = por %p61, %p62
      %p64 = scmp.ne.s32.totalorder %s55, %s56
      %p65 = scmp.eq.s32.totalorder %s24, 0
      %p66 = por %p64, %p65
      %p67 = scmp.ne.s32.totalorder %s55, %s56
      %p68 = scmp.eq.s32.totalorder %s25, 1
      %p69 = por %p67, %p68
      %p71 = scmp.ne.s32.totalorder %s56, %s70
      %p72 = scmp.eq.s32.totalorder %s25, 0
      %p73 = por %p71, %p72
      %s75 = sadd.s32 %s74, 1
      %p78 = scmp.eq.s32.totalorder %s19, 1
      %p79 = scmp.ne.s32.totalorder %s74, %s76
      %p80 = scmp.eq.s32.totalorder %s19, 0
      %p81 = por %p79, %p80
      %p82 = scmp.ne.s32.totalorder %s74, %s76
      %p83 = scmp.eq.s32.totalorder %s24, 1
      %p84 = por %p82, %p83
      %p85 = scmp.ne.s32.totalorder %s76, %s77
      %p86 = scmp.eq.s32.totalorder %s24, 0
      %p87 = por %p85, %p86
      %p88 = scmp.ne.s32.totalorder %s76, %s77
      %p89 = scmp.eq.s32.totalorder %s25, 1
      %p90 = por %p88, %p89
      %p92 = scmp.ne.s32.totalorder %s77, %s91
      %p93 = scmp.eq.s32.totalorder %s25, 0
      %p94 = por %p92, %p93
      %s96 = sadd.s32 %s95, 1
      %p99 = scmp.eq.s32.totalorder %s19, 1
      %p100 = scmp.ne.s32.totalorder %s95, %s97
      %p101 = scmp.eq.s32.totalorder %s19, 0
      %p102 = por %p100, %p101
      %p103 = scmp.ne.s32.totalorder %s95, %s97
      %p104 = scmp.eq.s32.totalorder %s24, 1
      %p105 = por %p103, %p104
      %p106 = scmp.ne.s32.totalorder %s97, %s98
      %p107 = scmp.eq.s32.totalorder %s24, 0
      %p108 = por %p106, %p107
      %p109 = scmp.ne.s32.totalorder %s97, %s98
      %p110 = scmp.eq.s32.totalorder %s25, 1
      %p111 = por %p109, %p110
      %p113 = scmp.ne.s32.totalorder %s98, %s112
      %p114 = scmp.eq.s32.totalorder %s25, 0
      %p115 = por %p113, %p114
      %s117 = sadd.s32 %s116, 1
      %p120 = scmp.eq.s32.totalorder %s19, 1
      %p121 = scmp.ne.s32.totalorder %s116, %s118
      %p122 = scmp.eq.s32.totalorder %s19, 0
      %p123 = por %p121, %p122
      %p124 = scmp.ne.s32.totalorder %s116, %s118
      %p125 = scmp.eq.s32.totalorder %s24, 1
      %p126 = por %p124, %p125
      %p127 = scmp.ne.s32.totalorder %s118, %s119
      %p128 = scmp.eq.s32.totalorder %s24, 0
      %p129 = por %p127, %p128
      %p130 = scmp.ne.s32.totalorder %s118, %s119
      %p131 = scmp.eq.s32.totalorder %s25, 1
      %p132 = por %p130, %p131
      %p134 = scmp.ne.s32.totalorder %s119, %s133
      %p135 = scmp.eq.s32.totalorder %s25, 0
      %p136 = por %p134, %p135
      %s137 = ssub.s32 %s19, %s26
      %p138 = scmp.eq.s32.totalorder %s137, 0
      %s140 = sadd.s32 %s139, 1
      %s141 = scalar_select %p138, %s139, %s140
      %p144 = pneg %p138
      %p145 = scmp.eq.s32.totalorder %s19, 1
      %p146 = por %p144, %p145
      %p147 = scmp.ne.s32.totalorder %s139, %s142
      %p148 = scmp.eq.s32.totalorder %s19, 0
      %p149 = por %p147, %p148
      %p150 = scmp.ne.s32.totalorder %s139, %s142
      %p151 = scmp.eq.s32.totalorder %s24, 1
      %p152 = por %p150, %p151
      %p153 = scmp.ne.s32.totalorder %s142, %s143
      %p154 = scmp.eq.s32.totalorder %s24, 0
      %p155 = por %p153, %p154
      %p156 = scmp.ne.s32.totalorder %s142, %s143
      %p157 = scmp.eq.s32.totalorder %s25, 1
      %p158 = por %p156, %p157
      %p160 = scmp.ne.s32.totalorder %s143, %s159
      %p161 = scmp.eq.s32.totalorder %s25, 0
      %p162 = por %p160, %p161
      %p163 = scmp.le.s32.totalorder 1, %s19
      %p164 = scmp.lt.s32.totalorder %s19, 3
      %p165 = pnand %p163, %p164
      %p166 = pneg %p165
      // Predicated region
      $region9: #{tpu_custom_call.1} parent=5 // pred_check
        _
      $region10: #{tpu_custom_call.1} parent=5 // pred_check_branch
        %168 = sbr.rel (%p165) target = $region12
      $region11: #{tpu_custom_call.1} parent=5 // pred_region
        %s169 = ssub.s32 %s19, 1
        // Predicated region
        $region13: #{tpu_custom_call.1} parent=11 // pred_check
          %p170 = pneg %p66
        $region14: #{tpu_custom_call.1} parent=11 // pred_check_branch
          %172 = sbr.rel (%p170) target = $region16
        $region15: #{tpu_custom_call.1} parent=11 // pred_region
          %s174 = ssub.s32 256, 256
          %175 = vsyncadd [#allocation7], %s174
          %s176 = sshll.u32 [#allocation6], 4
          %s177 = int_to_ptr.vmem [resolvable:$true] %s176
          %182 = dma.hbm_to_vmem [thread:$0]  %s1, 256, %s177, [#allocation7], 64, 64, 4
        $region16: #{tpu_custom_call.1} parent=11 // pred_fallthru
          _
        // Predicated region
        $region17: #{tpu_custom_call.1} parent=11 // pred_check
          %p183 = pneg %p87
        $region18: #{tpu_custom_call.1} parent=11 // pred_check_branch
          %185 = sbr.rel (%p183) target = $region20
        $region19: #{tpu_custom_call.1} parent=11 // pred_region
          %s187 = ssub.s32 16, 16
          %188 = vsyncadd [#allocation7], %s187
          %s190 = sshll.u32 [#allocation8], 4
          %s191 = int_to_ptr.vmem [resolvable:$true] %s190
          %193 = dma.hbm_to_vmem [thread:$0]  %s2, 16, %s191, [#allocation7]
        $region20: #{tpu_custom_call.1} parent=11 // pred_fallthru
          _
        // Predicated region
        $region21: #{tpu_custom_call.1} parent=11 // pred_check
          %p194 = pneg %p108
        $region22: #{tpu_custom_call.1} parent=11 // pred_check_branch
          %196 = sbr.rel (%p194) target = $region24
        $region23: #{tpu_custom_call.1} parent=11 // pred_region
          %s198 = ssub.s32 256, 256
          %199 = vsyncadd [#allocation10], %s198
          %s200 = sshll.u32 [#allocation9], 4
          %s201 = int_to_ptr.vmem [resolvable:$true] %s200
          %206 = dma.hbm_to_vmem [thread:$0]  %s3, 256, %s201, [#allocation10], 64, 64, 4
        $region24: #{tpu_custom_call.1} parent=11 // pred_fallthru
          _
        // Predicated region
        $region25: #{tpu_custom_call.1} parent=11 // pred_check
          %p207 = pneg %p129
        $region26: #{tpu_custom_call.1} parent=11 // pred_check_branch
          %209 = sbr.rel (%p207) target = $region28
        $region27: #{tpu_custom_call.1} parent=11 // pred_region
          %s211 = ssub.s32 16, 16
          %212 = vsyncadd [#allocation10], %s211
          %s214 = sshll.u32 [#allocation11], 4
          %s215 = int_to_ptr.vmem [resolvable:$true] %s214
          %217 = dma.hbm_to_vmem [thread:$0]  %s4, 16, %s215, [#allocation10]
        $region28: #{tpu_custom_call.1} parent=11 // pred_fallthru
          _
      $region12: #{tpu_custom_call.1} parent=5 // pred_fallthru
        _
      %p218 = scmp.lt.s32.totalorder %s19, 2
      // Predicated region
      $region29: #{tpu_custom_call.1} parent=5 // pred_check
        %p219 = pneg %p218
      $region30: #{tpu_custom_call.1} parent=5 // pred_check_branch
        %221 = sbr.rel (%p219) target = $region32
      $region31: #{tpu_custom_call.1} parent=5 // pred_region
        // Predicated region
        $region33: #{tpu_custom_call.1} parent=31 // pred_check
          %p222 = pneg %p39
        $region34: #{tpu_custom_call.1} parent=31 // pred_check_branch
          %224 = sbr.rel (%p222) target = $region36
        $region35: #{tpu_custom_call.1} parent=31 // pred_region
          %s225 = sand.u32 %s29, 1
          %s226 = scalar_lea.sflag [#allocation4], %s225
          %s227 = sand.u32 %s29, 1
          %s228 = smul.addr %s227, 4
          %s229 = scalar_lea.vmem [#allocation3], %s228
          %s231 = ssub.s32 64, 64
          %232 = vsyncadd %s226, %s231
          %s233 = smul.addr %s19, 64
          %s234 = scalar_lea.hbm %s0, %s233
          %s236 = sshll.u32 %s229, 4
          %s237 = int_to_ptr.vmem [resolvable:$true] %s236
          %239 = dma.hbm_to_vmem [thread:$0]  %s234, 64, %s237, %s226
        $region36: #{tpu_custom_call.1} parent=31 // pred_fallthru
          _
      $region32: #{tpu_custom_call.1} parent=5 // pred_fallthru
        _
      %p240 = scmp.le.s32.totalorder 1, %s19
      %p241 = scmp.lt.s32.totalorder %s19, 3
      %p242 = pnand %p240, %p241
      %p243 = pneg %p242
      // Predicated region
      $region37: #{tpu_custom_call.1} parent=5 // pred_check
        _
      $region38: #{tpu_custom_call.1} parent=5 // pred_check_branch
        %245 = sbr.rel (%p242) target = $region40
      $region39: #{tpu_custom_call.1} parent=5 // pred_region
        %s246 = ssub.s32 %s19, 1
        %s247 = sand.u32 %s32, 1
        %s248 = scalar_lea.sflag [#allocation4], %s247
        %s249 = sand.u32 %s32, 1
        %s250 = smul.addr %s249, 4
        %s251 = scalar_lea.vmem [#allocation3], %s250
        // Predicated region
        $region41: #{tpu_custom_call.1} parent=39 // pred_check
          %p252 = pneg %p45
        $region42: #{tpu_custom_call.1} parent=39 // pred_check_branch
          %254 = sbr.rel (%p252) target = $region44
        $region43: #{tpu_custom_call.1} parent=39 // pred_region
          %255 = dma.done %s248, 64
        $region44: #{tpu_custom_call.1} parent=39 // pred_fallthru
          _
        // Predicated region
        $region45: #{tpu_custom_call.1} parent=39 // pred_check
          %p256 = pneg %p66
        $region46: #{tpu_custom_call.1} parent=39 // pred_check_branch
          %258 = sbr.rel (%p256) target = $region48
        $region47: #{tpu_custom_call.1} parent=39 // pred_region
          %259 = dma.done [#allocation7], 256
        $region48: #{tpu_custom_call.1} parent=39 // pred_fallthru
          _
        // Predicated region
        $region49: #{tpu_custom_call.1} parent=39 // pred_check
          %p260 = pneg %p87
        $region50: #{tpu_custom_call.1} parent=39 // pred_check_branch
          %262 = sbr.rel (%p260) target = $region52
        $region51: #{tpu_custom_call.1} parent=39 // pred_region
          %263 = dma.done [#allocation7], 16
        $region52: #{tpu_custom_call.1} parent=39 // pred_fallthru
          _
        // Predicated region
        $region53: #{tpu_custom_call.1} parent=39 // pred_check
          %p264 = pneg %p108
        $region54: #{tpu_custom_call.1} parent=39 // pred_check_branch
          %266 = sbr.rel (%p264) target = $region56
        $region55: #{tpu_custom_call.1} parent=39 // pred_region
          %267 = dma.done [#allocation10], 256
        $region56: #{tpu_custom_call.1} parent=39 // pred_fallthru
          _
        // Predicated region
        $region57: #{tpu_custom_call.1} parent=39 // pred_check
          %p268 = pneg %p129
        $region58: #{tpu_custom_call.1} parent=39 // pred_check_branch
          %270 = sbr.rel (%p268) target = $region60
        $region59: #{tpu_custom_call.1} parent=39 // pred_region
          %271 = dma.done [#allocation10], 16
        $region60: #{tpu_custom_call.1} parent=39 // pred_fallthru
          _
        %s272 = sand.u32 %s32, 1
        %s273 = scalar_lea.sflag [#allocation4], %s272
        %s274 = sand.u32 %s32, 1
        %s275 = smul.addr %s274, 4
        %s276 = scalar_lea.vmem [#allocation3], %s275
        %p277 = pneg %p45
        %p278 = pneg %p42
        %p279 = pneg %p66
        %p280 = pneg %p63
        %p281 = pneg %p87
        %p282 = pneg %p84
        %p283 = pneg %p108
        %p284 = pneg %p105
        %p285 = pneg %p129
        %p286 = pneg %p126
        %p287 = pneg %p155
        %p288 = pneg %p152
        %s289 = sand.u32 %s142, 1
        %s290 = scalar_lea.sflag [#allocation5], %s289
        %s291 = sand.u32 %s142, 1
        %s292 = smul.addr %s291, 8
        %s293 = scalar_lea.vmem [#allocation12], %s292
        %v295 = vld [vmem:[%s251] sm:$0xf]
        %v296 = vld [vmem:[#allocation6] sm:$0xf]
        %v297 = vld [vmem:[#allocation6 + $0x4] sm:$0xf]
        %v298 = vld [vmem:[#allocation6 + $0x8] sm:$0xf]
        %v299 = vld [vmem:[#allocation6 + $0xc] sm:$0xf]
        %v300 = vld [vmem:[#allocation8] sm:$0x1]
        %v302 = vlaneseq
        %v303 = vshrl.u32 %v302, 7
        %v304 = vsub.s32 0, %v303
        %v305 = vrot.slane %v300, %v304
        %v311 = vunpack.c.l.b16 %v296
        %v312 = vunpack.c.l.b16 %v297
        %v313 = vunpack.c.l.b16 %v298
        %v314 = vunpack.c.l.b16 %v299
        %v315 = vpack.c.b16 %v312, %v311
        %v316 = vpack.c.b16 %v314, %v313
        %vm319 = vcmask 261120
        %v321 = vsel %vm319, %v295, 0
        %323 = vmatprep.subr.bf16.mxu0 0
        %324 = vmatpush1.bf16.msra.mxu0 %v315
        %325 = vmatprep.subr.bf16.mxu0 0
        %326 = vmatpush1.bf16.msra.mxu0 %v316
        %327 = vmatprep.subr.bf16.mxu0 0
        %328 = vmatpush1.bf16.msra.mxu0 0
        %329 = vmatprep.subr.bf16.mxu0 0
        %330 = vmatpush1.bf16.msra.mxu0 0
        %331 = vmatprep.subr.bf16.mxu0 0
        %332 = vmatpush1.bf16.msra.mxu0 0
        %333 = vmatprep.subr.bf16.mxu0 0
        %334 = vmatpush1.bf16.msra.mxu0 0
        %335 = vmatprep.subr.bf16.mxu0 0
        %336 = vmatpush1.bf16.msra.mxu0 0
        %337 = vmatprep.subr.bf16.mxu0 0
        %338 = vmatpush1.bf16.msra.mxu0 0
        %339 = vmatprep.subr.bf16.mxu0 0
        %340 = vmatpush1.bf16.msra.mxu0 0
        %341 = vmatprep.subr.bf16.mxu0 0
        %342 = vmatpush1.bf16.msra.mxu0 0
        %343 = vmatprep.subr.bf16.mxu0 0
        %344 = vmatpush1.bf16.msra.mxu0 0
        %345 = vmatprep.subr.bf16.mxu0 0
        %346 = vmatpush1.bf16.msra.mxu0 0
        %347 = vmatprep.subr.bf16.mxu0 0
        %348 = vmatpush1.bf16.msra.mxu0 0
        %349 = vmatprep.subr.bf16.mxu0 0
        %350 = vmatpush1.bf16.msra.mxu0 0
        %351 = vmatprep.subr.bf16.mxu0 0
        %352 = vmatpush1.bf16.msra.mxu0 0
        %353 = vmatprep.subr.bf16.mxu0 0
        %354 = vmatpush1.bf16.msra.mxu0 0
        %355 = vmatprep.mubr.bf16.mxu0 0
        %356 = vmatmul.mubr.bf16.gmra.mrb[0].mxu0 %v321
        %v357 = vpop.f32.mrb[0].mxu0
        %v358 = vadd.f32 %v305, %v357
        %v359 = vpop.f32.mrb[0].mxu0
        %v360 = vpop.f32.mrb[0].mxu0
        %v361 = vpop.f32.mrb[0].mxu0
        %362 = vdwg.mxu0
        %v363 = vpack.c.bf16 %v358, %v358
        %365 = vrot.lane.b32.xlu0 %v363, 96
        %v366 = vpop.permute.xlu0 %365
        %vm367 = vcmask 64512
        %v369 = vsel %vm367, %v363, 0
        %v372 = vsel %vm367, %v366, 0
        %374 = vmatprep.subr.bf16.mxu0 0
        %375 = vmatpush1.bf16.xpose.msra.mxu0 %v372
        %376 = vmatprep.subr.bf16.mxu0 0
        %377 = vmatpush1.bf16.xpose.msra.mxu0 0
        %378 = vmatprep.subr.bf16.mxu0 0
        %379 = vmatpush1.bf16.xpose.msra.mxu0 0
        %380 = vmatprep.subr.bf16.mxu0 0
        %381 = vmatpush1.bf16.xpose.msra.mxu0 0
        %382 = vmatprep.subr.bf16.mxu0 0
        %383 = vmatpush1.bf16.xpose.msra.mxu0 0
        %384 = vmatprep.subr.bf16.mxu0 0
        %385 = vmatpush1.bf16.xpose.msra.mxu0 0
        %386 = vmatprep.subr.bf16.mxu0 0
        %387 = vmatpush1.bf16.xpose.msra.mxu0 0
        %388 = vmatprep.subr.bf16.mxu0 0
        %389 = vmatpush1.bf16.xpose.msra.mxu0 0
        %390 = vmatprep.subr.bf16.mxu0 0
        %391 = vmatpush1.bf16.xpose.msra.mxu0 0
        %392 = vmatprep.subr.bf16.mxu0 0
        %393 = vmatpush1.bf16.xpose.msra.mxu0 0
        %394 = vmatprep.subr.bf16.mxu0 0
        %395 = vmatpush1.bf16.xpose.msra.mxu0 0
        %396 = vmatprep.subr.bf16.mxu0 0
        %397 = vmatpush1.bf16.xpose.msra.mxu0 0
        %398 = vmatprep.subr.bf16.mxu0 0
        %399 = vmatpush1.bf16.xpose.msra.mxu0 0
        %400 = vmatprep.subr.bf16.mxu0 0
        %401 = vmatpush1.bf16.xpose.msra.mxu0 0
        %402 = vmatprep.subr.bf16.mxu0 0
        %403 = vmatpush1.bf16.xpose.msra.mxu0 0
        %404 = vmatprep.subr.bf16.mxu0 0
        %405 = vmatpush1.bf16.xpose.msra.mxu0 0
        %406 = vmatprep.mubr.bf16.mxu0 0
        %407 = vmatmul.mubr.bf16.gmra.mrb[0].mxu0 %v369
        %v408 = vpop.f32.mrb[0].mxu0
        %v409 = vadd.f32 0.0, %v408
        %v410 = vpop.f32.mrb[0].mxu0
        %v411 = vpop.f32.mrb[0].mxu0
        %v412 = vpop.f32.mrb[0].mxu0
        %413 = vdwg.mxu0
        %v414 = vsel %vm367, %v409, -inf
        %415 = vmax.xlane.f32.xlu0 %v414
        %v416 = vpop.xlane.xlu0 %415
        %v417 = vsub.f32 %v409, %v416
        %v418 = vmul.f32 %v417, 1.442695
        %v419 = vpow.pop %v418
        %v420 = vsel %vm367, %v419, 0.0
        %421 = vadd.xlane.f32.xlu0 %v420
        %v422 = vpop.xlane.xlu0 %421
        %v423 = vpack.c.bf16 %v419, %v419
        %424 = vrot.lane.b32.xlu0 %v363, 64
        %v425 = vpop.permute.xlu0 %424
        %v427 = vsel %vm367, %v423, 0
        %vm429 = vcmask 1043456
        %v431 = vsel %vm429, %v425, 0
        %433 = vmatprep.subr.bf16.mxu0 0
        %434 = vmatpush1.bf16.msra.mxu0 %v431
        %435 = vmatprep.subr.bf16.mxu0 0
        %436 = vmatpush1.bf16.msra.mxu0 0
        %437 = vmatprep.subr.bf16.mxu0 0
        %438 = vmatpush1.bf16.msra.mxu0 0
        %439 = vmatprep.subr.bf16.mxu0 0
        %440 = vmatpush1.bf16.msra.mxu0 0
        %441 = vmatprep.subr.bf16.mxu0 0
        %442 = vmatpush1.bf16.msra.mxu0 0
        %443 = vmatprep.subr.bf16.mxu0 0
        %444 = vmatpush1.bf16.msra.mxu0 0
        %445 = vmatprep.subr.bf16.mxu0 0
        %446 = vmatpush1.bf16.msra.mxu0 0
        %447 = vmatprep.subr.bf16.mxu0 0
        %448 = vmatpush1.bf16.msra.mxu0 0
        %449 = vmatprep.subr.bf16.mxu0 0
        %450 = vmatpush1.bf16.msra.mxu0 0
        %451 = vmatprep.subr.bf16.mxu0 0
        %452 = vmatpush1.bf16.msra.mxu0 0
        %453 = vmatprep.subr.bf16.mxu0 0
        %454 = vmatpush1.bf16.msra.mxu0 0
        %455 = vmatprep.subr.bf16.mxu0 0
        %456 = vmatpush1.bf16.msra.mxu0 0
        %457 = vmatprep.subr.bf16.mxu0 0
        %458 = vmatpush1.bf16.msra.mxu0 0
        %459 = vmatprep.subr.bf16.mxu0 0
        %460 = vmatpush1.bf16.msra.mxu0 0
        %461 = vmatprep.subr.bf16.mxu0 0
        %462 = vmatpush1.bf16.msra.mxu0 0
        %463 = vmatprep.subr.bf16.mxu0 0
        %464 = vmatpush1.bf16.msra.mxu0 0
        %465 = vmatprep.mubr.bf16.mxu0 0
        %466 = vmatmul.mubr.bf16.gmra.mrb[0].mxu0 %v427
        %v467 = vpop.f32.mrb[0].mxu0
        %v468 = vadd.f32 0.0, %v467
        %v469 = vpop.f32.mrb[0].mxu0
        %v470 = vpop.f32.mrb[0].mxu0
        %v471 = vpop.f32.mrb[0].mxu0
        %472 = vdwg.mxu0
        %v473 = vrcp.pop %v422
        %v474 = vmul.f32 %v468, %v473
        %475 = vst.msk [vmem:[#allocation2] sm:$0xff] %vm367, %v474
        %476 = vrot.lane.b32.xlu0 %v363, 120
        %v477 = vpop.permute.xlu0 %476
        %478 = vrot.lane.b32.xlu0 %v363, 88
        %v479 = vpop.permute.xlu0 %478
        %v481 = vsel %vm367, %v477, 0
        %v484 = vsel %vm367, %v479, 0
        %486 = vmatprep.subr.bf16.mxu0 0
        %487 = vmatpush1.bf16.xpose.msra.mxu0 %v484
        %488 = vmatprep.subr.bf16.mxu0 0
        %489 = vmatpush1.bf16.xpose.msra.mxu0 0
        %490 = vmatprep.subr.bf16.mxu0 0
        %491 = vmatpush1.bf16.xpose.msra.mxu0 0
        %492 = vmatprep.subr.bf16.mxu0 0
        %493 = vmatpush1.bf16.xpose.msra.mxu0 0
        %494 = vmatprep.subr.bf16.mxu0 0
        %495 = vmatpush1.bf16.xpose.msra.mxu0 0
        %496 = vmatprep.subr.bf16.mxu0 0
        %497 = vmatpush1.bf16.xpose.msra.mxu0 0
        %498 = vmatprep.subr.bf16.mxu0 0
        %499 = vmatpush1.bf16.xpose.msra.mxu0 0
        %500 = vmatprep.subr.bf16.mxu0 0
        %501 = vmatpush1.bf16.xpose.msra.mxu0 0
        %502 = vmatprep.subr.bf16.mxu0 0
        %503 = vmatpush1.bf16.xpose.msra.mxu0 0
        %504 = vmatprep.subr.bf16.mxu0 0
        %505 = vmatpush1.bf16.xpose.msra.mxu0 0
        %506 = vmatprep.subr.bf16.mxu0 0
        %507 = vmatpush1.bf16.xpose.msra.mxu0 0
        %508 = vmatprep.subr.bf16.mxu0 0
        %509 = vmatpush1.bf16.xpose.msra.mxu0 0
        %510 = vmatprep.subr.bf16.mxu0 0
        %511 = vmatpush1.bf16.xpose.msra.mxu0 0
        %512 = vmatprep.subr.bf16.mxu0 0
        %513 = vmatpush1.bf16.xpose.msra.mxu0 0
        %514 = vmatprep.subr.bf16.mxu0 0
        %515 = vmatpush1.bf16.xpose.msra.mxu0 0
        %516 = vmatprep.subr.bf16.mxu0 0
        %517 = vmatpush1.bf16.xpose.msra.mxu0 0
        %518 = vmatprep.mubr.bf16.mxu0 0
        %519 = vmatmul.mubr.bf16.gmra.mrb[0].mxu0 %v481
        %v520 = vpop.f32.mrb[0].mxu0
        %v521 = vadd.f32 0.0, %v520
        %v522 = vpop.f32.mrb[0].mxu0
        %v523 = vpop.f32.mrb[0].mxu0
        %v524 = vpop.f32.mrb[0].mxu0
        %525 = vdwg.mxu0
        %v526 = vsel %vm367, %v521, -inf
        %527 = vmax.xlane.f32.xlu0 %v526
        %v528 = vpop.xlane.xlu0 %527
        %v529 = vsub.f32 %v521, %v528
        %v530 = vmul.f32 %v529, 1.442695
        %v531 = vpow.pop %v530
        %v532 = vsel %vm367, %v531, 0.0
        %533 = vadd.xlane.f32.xlu0 %v532
        %v534 = vpop.xlane.xlu0 %533
        %v535 = vpack.c.bf16 %v531, %v531
        %536 = vrot.lane.b32.xlu0 %v363, 56
        %v537 = vpop.permute.xlu0 %536
        %v539 = vsel %vm367, %v535, 0
        %v542 = vsel %vm429, %v537, 0
        %544 = vmatprep.subr.bf16.mxu0 0
        %545 = vmatpush1.bf16.msra.mxu0 %v542
        %546 = vmatprep.subr.bf16.mxu0 0
        %547 = vmatpush1.bf16.msra.mxu0 0
        %548 = vmatprep.subr.bf16.mxu0 0
        %549 = vmatpush1.bf16.msra.mxu0 0
        %550 = vmatprep.subr.bf16.mxu0 0
        %551 = vmatpush1.bf16.msra.mxu0 0
        %552 = vmatprep.subr.bf16.mxu0 0
        %553 = vmatpush1.bf16.msra.mxu0 0
        %554 = vmatprep.subr.bf16.mxu0 0
        %555 = vmatpush1.bf16.msra.mxu0 0
        %556 = vmatprep.subr.bf16.mxu0 0
        %557 = vmatpush1.bf16.msra.mxu0 0
        %558 = vmatprep.subr.bf16.mxu0 0
        %559 = vmatpush1.bf16.msra.mxu0 0
        %560 = vmatprep.subr.bf16.mxu0 0
        %561 = vmatpush1.bf16.msra.mxu0 0
        %562 = vmatprep.subr.bf16.mxu0 0
        %563 = vmatpush1.bf16.msra.mxu0 0
        %564 = vmatprep.subr.bf16.mxu0 0
        %565 = vmatpush1.bf16.msra.mxu0 0
        %566 = vmatprep.subr.bf16.mxu0 0
        %567 = vmatpush1.bf16.msra.mxu0 0
        %568 = vmatprep.subr.bf16.mxu0 0
        %569 = vmatpush1.bf16.msra.mxu0 0
        %570 = vmatprep.subr.bf16.mxu0 0
        %571 = vmatpush1.bf16.msra.mxu0 0
        %572 = vmatprep.subr.bf16.mxu0 0
        %573 = vmatpush1.bf16.msra.mxu0 0
        %574 = vmatprep.subr.bf16.mxu0 0
        %575 = vmatpush1.bf16.msra.mxu0 0
        %576 = vmatprep.mubr.bf16.mxu0 0
        %577 = vmatmul.mubr.bf16.gmra.mrb[0].mxu0 %v539
        %v578 = vpop.f32.mrb[0].mxu0
        %v579 = vadd.f32 0.0, %v578
        %v580 = vpop.f32.mrb[0].mxu0
        %v581 = vpop.f32.mrb[0].mxu0
        %v582 = vpop.f32.mrb[0].mxu0
        %583 = vdwg.mxu0
        %v584 = vrcp.pop %v534
        %v585 = vmul.f32 %v579, %v584
        %587 = vrot.lane.b32.xlu0 %v585, 8
        %v588 = vpop.permute.xlu0 %587
        %vm590 = vcmask 130112
        %591 = vst.msk [vmem:[#allocation2] sm:$0xff] %vm590, %v588
        %592 = vrot.lane.b32.xlu0 %v363, 112
        %v593 = vpop.permute.xlu0 %592
        %594 = vrot.lane.b32.xlu0 %v363, 80
        %v595 = vpop.permute.xlu0 %594
        %v597 = vsel %vm367, %v593, 0
        %v600 = vsel %vm367, %v595, 0
        %602 = vmatprep.subr.bf16.mxu0 0
        %603 = vmatpush1.bf16.xpose.msra.mxu0 %v600
        %604 = vmatprep.subr.bf16.mxu0 0
        %605 = vmatpush1.bf16.xpose.msra.mxu0 0
        %606 = vmatprep.subr.bf16.mxu0 0
        %607 = vmatpush1.bf16.xpose.msra.mxu0 0
        %608 = vmatprep.subr.bf16.mxu0 0
        %609 = vmatpush1.bf16.xpose.msra.mxu0 0
        %610 = vmatprep.subr.bf16.mxu0 0
        %611 = vmatpush1.bf16.xpose.msra.mxu0 0
        %612 = vmatprep.subr.bf16.mxu0 0
        %613 = vmatpush1.bf16.xpose.msra.mxu0 0
        %614 = vmatprep.subr.bf16.mxu0 0
        %615 = vmatpush1.bf16.xpose.msra.mxu0 0
        %616 = vmatprep.subr.bf16.mxu0 0
        %617 = vmatpush1.bf16.xpose.msra.mxu0 0
        %618 = vmatprep.subr.bf16.mxu0 0
        %619 = vmatpush1.bf16.xpose.msra.mxu0 0
        %620 = vmatprep.subr.bf16.mxu0 0
        %621 = vmatpush1.bf16.xpose.msra.mxu0 0
        %622 = vmatprep.subr.bf16.mxu0 0
        %623 = vmatpush1.bf16.xpose.msra.mxu0 0
        %624 = vmatprep.subr.bf16.mxu0 0
        %625 = vmatpush1.bf16.xpose.msra.mxu0 0
        %626 = vmatprep.subr.bf16.mxu0 0
        %627 = vmatpush1.bf16.xpose.msra.mxu0 0
        %628 = vmatprep.subr.bf16.mxu0 0
        %629 = vmatpush1.bf16.xpose.msra.mxu0 0
        %630 = vmatprep.subr.bf16.mxu0 0
        %631 = vmatpush1.bf16.xpose.msra.mxu0 0
        %632 = vmatprep.subr.bf16.mxu0 0
        %633 = vmatpush1.bf16.xpose.msra.mxu0 0
        %634 = vmatprep.mubr.bf16.mxu0 0
        %635 = vmatmul.mubr.bf16.gmra.mrb[0].mxu0 %v597
        %v636 = vpop.f32.mrb[0].mxu0
        %v637 = vadd.f32 0.0, %v636
        %v638 = vpop.f32.mrb[0].mxu0
        %v639 = vpop.f32.mrb[0].mxu0
        %v640 = vpop.f32.mrb[0].mxu0
        %641 = vdwg.mxu0
        %v642 = vsel %vm367, %v637, -inf
        %643 = vmax.xlane.f32.xlu0 %v642
        %v644 = vpop.xlane.xlu0 %643
        %v645 = vsub.f32 %v637, %v644
        %v646 = vmul.f32 %v645, 1.442695
        %v647 = vpow.pop %v646
        %v648 = vsel %vm367, %v647, 0.0
        %649 = vadd.xlane.f32.xlu0 %v648
        %v650 = vpop.xlane.xlu0 %649
        %v651 = vpack.c.bf16 %v647, %v647
        %652 = vrot.lane.b32.xlu0 %v363, 48
        %v653 = vpop.permute.xlu0 %652
        %v655 = vsel %vm367, %v651, 0
        %v658 = vsel %vm429, %v653, 0
        %660 = vmatprep.subr.bf16.mxu0 0
        %661 = vmatpush1.bf16.msra.mxu0 %v658
        %662 = vmatprep.subr.bf16.mxu0 0
        %663 = vmatpush1.bf16.msra.mxu0 0
        %664 = vmatprep.subr.bf16.mxu0 0
        %665 = vmatpush1.bf16.msra.mxu0 0
        %666 = vmatprep.subr.bf16.mxu0 0
        %667 = vmatpush1.bf16.msra.mxu0 0
        %668 = vmatprep.subr.bf16.mxu0 0
        %669 = vmatpush1.bf16.msra.mxu0 0
        %670 = vmatprep.subr.bf16.mxu0 0
        %671 = vmatpush1.bf16.msra.mxu0 0
        %672 = vmatprep.subr.bf16.mxu0 0
        %673 = vmatpush1.bf16.msra.mxu0 0
        %674 = vmatprep.subr.bf16.mxu0 0
        %675 = vmatpush1.bf16.msra.mxu0 0
        %676 = vmatprep.subr.bf16.mxu0 0
        %677 = vmatpush1.bf16.msra.mxu0 0
        %678 = vmatprep.subr.bf16.mxu0 0
        %679 = vmatpush1.bf16.msra.mxu0 0
        %680 = vmatprep.subr.bf16.mxu0 0
        %681 = vmatpush1.bf16.msra.mxu0 0
        %682 = vmatprep.subr.bf16.mxu0 0
        %683 = vmatpush1.bf16.msra.mxu0 0
        %684 = vmatprep.subr.bf16.mxu0 0
        %685 = vmatpush1.bf16.msra.mxu0 0
        %686 = vmatprep.subr.bf16.mxu0 0
        %687 = vmatpush1.bf16.msra.mxu0 0
        %688 = vmatprep.subr.bf16.mxu0 0
        %689 = vmatpush1.bf16.msra.mxu0 0
        %690 = vmatprep.subr.bf16.mxu0 0
        %691 = vmatpush1.bf16.msra.mxu0 0
        %692 = vmatprep.mubr.bf16.mxu0 0
        %693 = vmatmul.mubr.bf16.gmra.mrb[0].mxu0 %v655
        %v694 = vpop.f32.mrb[0].mxu0
        %v695 = vadd.f32 0.0, %v694
        %v696 = vpop.f32.mrb[0].mxu0
        %v697 = vpop.f32.mrb[0].mxu0
        %v698 = vpop.f32.mrb[0].mxu0
        %699 = vdwg.mxu0
        %v700 = vrcp.pop %v650
        %v701 = vmul.f32 %v695, %v700
        %703 = vrot.lane.b32.xlu0 %v701, 16
        %v704 = vpop.permute.xlu0 %703
        %vm706 = vcmask 195712
        %707 = vst.msk [vmem:[#allocation2] sm:$0xff] %vm706, %v704
        %708 = vrot.lane.b32.xlu0 %v363, 104
        %v709 = vpop.permute.xlu0 %708
        %710 = vrot.lane.b32.xlu0 %v363, 72
        %v711 = vpop.permute.xlu0 %710
        %v713 = vsel %vm367, %v709, 0
        %v716 = vsel %vm367, %v711, 0
        %718 = vmatprep.subr.bf16.mxu0 0
        %719 = vmatpush1.bf16.xpose.msra.mxu0 %v716
        %720 = vmatprep.subr.bf16.mxu0 0
        %721 = vmatpush1.bf16.xpose.msra.mxu0 0
        %722 = vmatprep.subr.bf16.mxu0 0
        %723 = vmatpush1.bf16.xpose.msra.mxu0 0
        %724 = vmatprep.subr.bf16.mxu0 0
        %725 = vmatpush1.bf16.xpose.msra.mxu0 0
        %726 = vmatprep.subr.bf16.mxu0 0
        %727 = vmatpush1.bf16.xpose.msra.mxu0 0
        %728 = vmatprep.subr.bf16.mxu0 0
        %729 = vmatpush1.bf16.xpose.msra.mxu0 0
        %730 = vmatprep.subr.bf16.mxu0 0
        %731 = vmatpush1.bf16.xpose.msra.mxu0 0
        %732 = vmatprep.subr.bf16.mxu0 0
        %733 = vmatpush1.bf16.xpose.msra.mxu0 0
        %734 = vmatprep.subr.bf16.mxu0 0
        %735 = vmatpush1.bf16.xpose.msra.mxu0 0
        %736 = vmatprep.subr.bf16.mxu0 0
        %737 = vmatpush1.bf16.xpose.msra.mxu0 0
        %738 = vmatprep.subr.bf16.mxu0 0
        %739 = vmatpush1.bf16.xpose.msra.mxu0 0
        %740 = vmatprep.subr.bf16.mxu0 0
        %741 = vmatpush1.bf16.xpose.msra.mxu0 0
        %742 = vmatprep.subr.bf16.mxu0 0
        %743 = vmatpush1.bf16.xpose.msra.mxu0 0
        %744 = vmatprep.subr.bf16.mxu0 0
        %745 = vmatpush1.bf16.xpose.msra.mxu0 0
        %746 = vmatprep.subr.bf16.mxu0 0
        %747 = vmatpush1.bf16.xpose.msra.mxu0 0
        %748 = vmatprep.subr.bf16.mxu0 0
        %749 = vmatpush1.bf16.xpose.msra.mxu0 0
        %750 = vmatprep.mubr.bf16.mxu0 0
        %751 = vmatmul.mubr.bf16.gmra.mrb[0].mxu0 %v713
        %v752 = vpop.f32.mrb[0].mxu0
        %v753 = vadd.f32 0.0, %v752
        %v754 = vpop.f32.mrb[0].mxu0
        %v755 = vpop.f32.mrb[0].mxu0
        %v756 = vpop.f32.mrb[0].mxu0
        %757 = vdwg.mxu0
        %v758 = vsel %vm367, %v753, -inf
        %759 = vmax.xlane.f32.xlu0 %v758
        %v760 = vpop.xlane.xlu0 %759
        %v761 = vsub.f32 %v753, %v760
        %v762 = vmul.f32 %v761, 1.442695
        %v763 = vpow.pop %v762
        %v764 = vsel %vm367, %v763, 0.0
        %765 = vadd.xlane.f32.xlu0 %v764
        %v766 = vpop.xlane.xlu0 %765
        %v767 = vpack.c.bf16 %v763, %v763
        %768 = vrot.lane.b32.xlu0 %v363, 40
        %v769 = vpop.permute.xlu0 %768
        %v771 = vsel %vm367, %v767, 0
        %v774 = vsel %vm429, %v769, 0
        %776 = vmatprep.subr.bf16.mxu0 0
        %777 = vmatpush1.bf16.msra.mxu0 %v774
        %778 = vmatprep.subr.bf16.mxu0 0
        %779 = vmatpush1.bf16.msra.mxu0 0
        %780 = vmatprep.subr.bf16.mxu0 0
        %781 = vmatpush1.bf16.msra.mxu0 0
        %782 = vmatprep.subr.bf16.mxu0 0
        %783 = vmatpush1.bf16.msra.mxu0 0
        %784 = vmatprep.subr.bf16.mxu0 0
        %785 = vmatpush1.bf16.msra.mxu0 0
        %786 = vmatprep.subr.bf16.mxu0 0
        %787 = vmatpush1.bf16.msra.mxu0 0
        %788 = vmatprep.subr.bf16.mxu0 0
        %789 = vmatpush1.bf16.msra.mxu0 0
        %790 = vmatprep.subr.bf16.mxu0 0
        %791 = vmatpush1.bf16.msra.mxu0 0
        %792 = vmatprep.subr.bf16.mxu0 0
        %793 = vmatpush1.bf16.msra.mxu0 0
        %794 = vmatprep.subr.bf16.mxu0 0
        %795 = vmatpush1.bf16.msra.mxu0 0
        %796 = vmatprep.subr.bf16.mxu0 0
        %797 = vmatpush1.bf16.msra.mxu0 0
        %798 = vmatprep.subr.bf16.mxu0 0
        %799 = vmatpush1.bf16.msra.mxu0 0
        %800 = vmatprep.subr.bf16.mxu0 0
        %801 = vmatpush1.bf16.msra.mxu0 0
        %802 = vmatprep.subr.bf16.mxu0 0
        %803 = vmatpush1.bf16.msra.mxu0 0
        %804 = vmatprep.subr.bf16.mxu0 0
        %805 = vmatpush1.bf16.msra.mxu0 0
        %806 = vmatprep.subr.bf16.mxu0 0
        %807 = vmatpush1.bf16.msra.mxu0 0
        %808 = vmatprep.mubr.bf16.mxu0 0
        %809 = vmatmul.mubr.bf16.gmra.mrb[0].mxu0 %v771
        %v810 = vpop.f32.mrb[0].mxu0
        %v811 = vadd.f32 0.0, %v810
        %v812 = vpop.f32.mrb[0].mxu0
        %v813 = vpop.f32.mrb[0].mxu0
        %v814 = vpop.f32.mrb[0].mxu0
        %815 = vdwg.mxu0
        %v816 = vrcp.pop %v766
        %v817 = vmul.f32 %v811, %v816
        %819 = vrot.lane.b32.xlu0 %v817, 24
        %v820 = vpop.permute.xlu0 %819
        %vm822 = vcmask 261312
        %823 = vst.msk [vmem:[#allocation2] sm:$0xff] %vm822, %v820
        %v824 = vld [vmem:[#allocation2] sm:$0xff]
        %v825 = vpack.c.bf16 %v824, %v824
        %v826 = vld [vmem:[#allocation9] sm:$0xf]
        %v827 = vld [vmem:[#allocation9 + $0x4] sm:$0xf]
        %v828 = vld [vmem:[#allocation9 + $0x8] sm:$0xf]
        %v829 = vld [vmem:[#allocation9 + $0xc] sm:$0xf]
        %v830 = vld [vmem:[#allocation11] sm:$0x1]
        %v832 = vlaneseq
        %v833 = vshrl.u32 %v832, 7
        %v834 = vsub.s32 0, %v833
        %v835 = vrot.slane %v830, %v834
        %v841 = vunpack.c.l.b16 %v826
        %v842 = vunpack.c.l.b16 %v827
        %v843 = vunpack.c.l.b16 %v828
        %v844 = vunpack.c.l.b16 %v829
        %v845 = vpack.c.b16 %v842, %v841
        %v846 = vpack.c.b16 %v844, %v843
        %v850 = vsel %vm319, %v825, 0
        %852 = vmatprep.subr.bf16.mxu0 0
        %853 = vmatpush1.bf16.msra.mxu0 %v845
        %854 = vmatprep.subr.bf16.mxu0 0
        %855 = vmatpush1.bf16.msra.mxu0 %v846
        %856 = vmatprep.subr.bf16.mxu0 0
        %857 = vmatpush1.bf16.msra.mxu0 0
        %858 = vmatprep.subr.bf16.mxu0 0
        %859 = vmatpush1.bf16.msra.mxu0 0
        %860 = vmatprep.subr.bf16.mxu0 0
        %861 = vmatpush1.bf16.msra.mxu0 0
        %862 = vmatprep.subr.bf16.mxu0 0
        %863 = vmatpush1.bf16.msra.mxu0 0
        %864 = vmatprep.subr.bf16.mxu0 0
        %865 = vmatpush1.bf16.msra.mxu0 0
        %866 = vmatprep.subr.bf16.mxu0 0
        %867 = vmatpush1.bf16.msra.mxu0 0
        %868 = vmatprep.subr.bf16.mxu0 0
        %869 = vmatpush1.bf16.msra.mxu0 0
        %870 = vmatprep.subr.bf16.mxu0 0
        %871 = vmatpush1.bf16.msra.mxu0 0
        %872 = vmatprep.subr.bf16.mxu0 0
        %873 = vmatpush1.bf16.msra.mxu0 0
        %874 = vmatprep.subr.bf16.mxu0 0
        %875 = vmatpush1.bf16.msra.mxu0 0
        %876 = vmatprep.subr.bf16.mxu0 0
        %877 = vmatpush1.bf16.msra.mxu0 0
        %878 = vmatprep.subr.bf16.mxu0 0
        %879 = vmatpush1.bf16.msra.mxu0 0
        %880 = vmatprep.subr.bf16.mxu0 0
        %881 = vmatpush1.bf16.msra.mxu0 0
        %882 = vmatprep.subr.bf16.mxu0 0
        %883 = vmatpush1.bf16.msra.mxu0 0
        %884 = vmatprep.mubr.bf16.mxu0 0
        %885 = vmatmul.mubr.bf16.gmra.mrb[0].mxu0 %v850
        %v886 = vpop.f32.mrb[0].mxu0
        %v887 = vadd.f32 %v835, %v886
        %v888 = vpop.f32.mrb[0].mxu0
        %v889 = vpop.f32.mrb[0].mxu0
        %v890 = vpop.f32.mrb[0].mxu0
        %891 = vdwg.mxu0
        %892 = vst.msk [vmem:[%s293] sm:$0xff] %vm319, %v887
        %s893 = sand.u32 %s142, 1
        %s894 = scalar_lea.sflag [#allocation5], %s893
        %s895 = sand.u32 %s142, 1
        %s896 = smul.addr %s895, 8
        %s897 = scalar_lea.vmem [#allocation12], %s896
        // Predicated region
        $region61: #{tpu_custom_call.1} parent=39 // pred_check
          %p898 = pneg %p152
        $region62: #{tpu_custom_call.1} parent=39 // pred_check_branch
          %900 = sbr.rel (%p898) target = $region64
        $region63: #{tpu_custom_call.1} parent=39 // pred_region
          %s902 = ssub.s32 128, 128
          %903 = vsyncadd %s894, %s902
          %s904 = smul.addr %s24, 128
          %s905 = scalar_lea.hbm %s5, %s904
          %s907 = sshll.u32 %s897, 4
          %s908 = int_to_ptr.vmem [resolvable:$true] %s907
          %910 = dma.vmem_to_hbm [thread:$0]  %s908, 128, %s905, %s894
        $region64: #{tpu_custom_call.1} parent=39 // pred_fallthru
          _
      $region40: #{tpu_custom_call.1} parent=5 // pred_fallthru
        _
      %p911 = scmp.le.s32.totalorder 2, %s19
      // Predicated region
      $region65: #{tpu_custom_call.1} parent=5 // pred_check
        %p912 = pneg %p911
      $region66: #{tpu_custom_call.1} parent=5 // pred_check_branch
        %914 = sbr.rel (%p912) target = $region68
      $region67: #{tpu_custom_call.1} parent=5 // pred_region
        %s915 = ssub.s32 %s19, 2
        // Predicated region
        $region69: #{tpu_custom_call.1} parent=67 // pred_check
          %p916 = pneg %p158
        $region70: #{tpu_custom_call.1} parent=67 // pred_check_branch
          %918 = sbr.rel (%p916) target = $region72
        $region71: #{tpu_custom_call.1} parent=67 // pred_region
          %s919 = sand.u32 %s143, 1
          %s920 = scalar_lea.sflag [#allocation5], %s919
          %s921 = sand.u32 %s143, 1
          %s922 = smul.addr %s921, 8
          %s923 = scalar_lea.vmem [#allocation12], %s922
          %924 = dma.done %s920, 128
        $region72: #{tpu_custom_call.1} parent=67 // pred_fallthru
          _
      $region68: #{tpu_custom_call.1} parent=5 // pred_fallthru
        _
    $region6: #{tpu_custom_call.1} parent=1 // loop_footer
      %s23 = sadd.s32 1, %s19
    $region7: #{tpu_custom_call.1} parent=1 // loop_footer_branch
      %18 = sbr.rel target = $region3
    $region8: #{tpu_custom_call.1} parent=1 // loop_exit
      _
    %925 = vsyncpa [#allocation4], 1
    %s926 = scalar_lea.sflag [#allocation4], 1
    %927 = vsyncpa %s926, 1
    %928 = vsyncpa [#allocation7], 1
    %929 = vsyncpa [#allocation10], 1
    %930 = vsyncpa [#allocation5], 1
    %s931 = scalar_lea.sflag [#allocation5], 1
    %932 = vsyncpa %s931, 1

</llo_original>
